<compile_context>
chip_gen: v5e
topology: v5e:2x2
jax: 0.10.0
libtpu: 0.0.40
codegen_flags: <defaults>
</compile_context>

<pallas_src>
import functools

import jax
import jax.numpy as jnp
from jax.experimental import pallas as pl
from jax.experimental.pallas import tpu as pltpu

LN_EPS = 1e-5  # torch.nn.LayerNorm default eps


def _round_up(n, m):
    return (n + m - 1) // m * m


@functools.lru_cache(maxsize=1)
def _vmem_budget_bytes():
    """Chip-aware VMEM budget with headroom for compiler scratch."""
    try:
        cap = int(pltpu.get_tpu_info().vmem_capacity_bytes)
    except Exception:
        cap = 64 << 20  # conservative fallback (v7x per-TensorCore)
    return max(24 << 20, int(cap * 0.75))


def _vmem_need_bytes(tm, d_pad, tf, n_chunks, x_bytes, w_bytes):
    """Rough VMEM footprint of one grid step (buffers + temporaries)."""
    wbuf = 1 if n_chunks == 1 else 2
    return (2 * tm * d_pad * x_bytes            # x tile (double-buffered)
            + 2 * tm * d_pad * x_bytes          # out tile (double-buffered)
            + wbuf * 2 * d_pad * tf * w_bytes   # W1 + W2 chunks
            + wbuf * tf * 4                     # b1 chunk
            + 3 * d_pad * 4                     # b2 / gamma / beta
            + tm * d_pad * 4                    # f32 accumulator scratch
            + tm * tf * 4                       # fc1 activation chunk (f32)
            + 2 * tm * d_pad * 4)               # residual / LN temporaries


def _choose_tiles(n_tokens, d_model, d_ff, x_bytes, w_bytes, tm_req, max_ff_chunk):
    """Pick (tm, D_pad, F_pad, tf) under the chip VMEM budget."""
    d_pad = _round_up(d_model, 128)
    f_base = _round_up(d_ff, 128)
    budget = _vmem_budget_bytes()

    if tm_req is None:
        tm = 256 if budget > (80 << 20) else 128   # smaller default on 64 MiB chips
    else:
        tm = tm_req
    tm = max(8, min(_round_up(tm, 8), _round_up(n_tokens, 8)))

    if max_ff_chunk is not None:
        tf = min(_round_up(max_ff_chunk, 128), f_base)
        return tm, d_pad, _round_up(f_base, tf), tf

    # Prefer fully resident weights (single d_ff chunk, single-buffered).
    if _vmem_need_bytes(tm, d_pad, f_base, 1, x_bytes, w_bytes) <= budget:
        return tm, d_pad, f_base, f_base

    # Otherwise stream d_ff in the largest chunk that fits.
    for tf in (4096, 2048, 1024, 512, 256, 128):
        if tf <= f_base:
            n_chunks = (f_base + tf - 1) // tf
            if _vmem_need_bytes(tm, d_pad, tf, n_chunks, x_bytes, w_bytes) <= budget:
                return tm, d_pad, _round_up(f_base, tf), tf
    return tm, d_pad, f_base, 128  # last resort: smallest chunk


def _ffn_kernel(x_ref, w1_ref, b1_ref, w2_ref, b2_ref, gamma_ref, beta_ref,
                o_ref, acc_ref, *, d_model, d_pad, bf16_matmul):
    """Grid step (i, kf): token tile i, d_ff chunk kf."""
    kf = pl.program_id(1)
    n_kf = pl.num_programs(1)

    @pl.when(kf == 0)
    def _():
        acc_ref[...] = jnp.zeros_like(acc_ref)

    x = x_ref[...]
    w1 = w1_ref[...]
    w2 = w2_ref[...]
    if bf16_matmul:
        x_mm = x.astype(jnp.bfloat16)
        w1 = w1.astype(jnp.bfloat16)   # no-op if wrapper already stored bf16
        w2 = w2.astype(jnp.bfloat16)
    else:
        x_mm = x

    b1 = b1_ref[...].astype(jnp.float32)

    # fc1 + bias + ReLU for this d_ff chunk (native-dtype MXU operands,
    # f32 accumulation).  dropout_2: identity in eval mode.
    h = jnp.dot(x_mm, w1, preferred_element_type=jnp.float32)
    h = jnp.maximum(h + b1, 0.0)

    # fc2 partial sum accumulated in f32 VMEM scratch.
    acc_ref[...] += jnp.dot(h.astype(w2.dtype), w2,
                            preferred_element_type=jnp.float32)

    @pl.when(kf == n_kf - 1)
    def _():
        b2 = b2_ref[...].astype(jnp.float32)
        gamma = gamma_ref[...].astype(jnp.float32)
        beta = beta_ref[...].astype(jnp.float32)

        y = acc_ref[...] + b2                    # dropout: identity in eval mode
        z = x.astype(jnp.float32) + y            # residual

        # Two-pass LayerNorm over the *true* d_model.  Padded feature columns of
        # z are exactly zero (zero-padded x, W2 columns, b2), so the sum for the
        # mean is exact; the centered values are masked before the variance.
        inv_d = jnp.float32(1.0 / d_model)
        mean = jnp.sum(z, axis=-1, keepdims=True) * inv_d
        zc = z - mean
        if d_pad != d_model:
            col = jax.lax.broadcasted_iota(jnp.int32, (1, d_pad), 1)
            zc = jnp.where(col < d_model, zc, 0.0)
        var = jnp.sum(zc * zc, axis=-1, keepdims=True) * inv_d
        out = zc * jax.lax.rsqrt(var + LN_EPS) * gamma + beta
        o_ref[...] = out.astype(o_ref.dtype)


@functools.partial(jax.jit, static_argnames=("tm", "bf16_matmul", "max_ff_chunk"))
def position_wise_ffn(x, w1, b1, w2, b2, gamma, beta, *,
                      tm=None, bf16_matmul=False, max_ff_chunk=None):
    """x: (B, S, d_model) -> (B, S, d_model).  Weights in math layout:
    w1 (d_model, d_ff), w2 (d_ff, d_model)."""
    B, S, d_model = x.shape
    d_ff = w1.shape[1]
    N = B * S

    x_bytes = jnp.dtype(x.dtype).itemsize
    w_bytes = 2 if bf16_matmul else jnp.dtype(w1.dtype).itemsize
    tm, D_pad, F_pad, tf = _choose_tiles(N, d_model, d_ff, x_bytes, w_bytes,
                                         tm, max_ff_chunk)
    N_pad = _round_up(N, tm)
    n_f = F_pad // tf

    # Pad only when necessary (skip the extra HBM pass in the aligned case).
    x2d = x.reshape(N, d_model)
    if (N_pad, D_pad) != (N, d_model):
        x2d = jnp.pad(x2d, ((0, N_pad - N), (0, D_pad - d_model)))
    w1p = w1 if (D_pad, F_pad) == (d_model, d_ff) else jnp.pad(
        w1, ((0, D_pad - d_model), (0, F_pad - d_ff)))
    w2p = w2 if (F_pad, D_pad) == (d_ff, d_model) else jnp.pad(
        w2, ((0, F_pad - d_ff), (0, D_pad - d_model)))
    if bf16_matmul:
        w1p = w1p.astype(jnp.bfloat16)
        w2p = w2p.astype(jnp.bfloat16)
    b1p = (b1 if F_pad == d_ff else jnp.pad(b1, (0, F_pad - d_ff))).reshape(1, F_pad)
    b2p = (b2 if D_pad == d_model else jnp.pad(b2, (0, D_pad - d_model))).reshape(1, D_pad)
    gp = (gamma if D_pad == d_model else jnp.pad(gamma, (0, D_pad - d_model))).reshape(1, D_pad)
    btp = (beta if D_pad == d_model else jnp.pad(beta, (0, D_pad - d_model))).reshape(1, D_pad)

    # Chip-aware VMEM limit (never above ~75% of physical capacity).
    budget = _vmem_budget_bytes()
    need = _vmem_need_bytes(tm, D_pad, tf, n_f, x_bytes, w_bytes)
    vmem_limit = int(min(max(int(need * 1.25), 24 << 20), budget))

    const_mode = pl.Buffered(1)                         # truly resident params
    w_mode = pl.Buffered(1) if n_f == 1 else pl.Buffered(2)   # resident vs streamed

    kernel = functools.partial(_ffn_kernel, d_model=d_model, d_pad=D_pad,
                               bf16_matmul=bf16_matmul)

    out2d = pl.pallas_call(
        kernel,
        out_shape=jax.ShapeDtypeStruct((N_pad, D_pad), x.dtype),
        grid_spec=pltpu.PrefetchScalarGridSpec(
            num_scalar_prefetch=0,
            grid=(N_pad // tm, n_f),
            in_specs=[
                pl.BlockSpec((tm, D_pad), lambda i, kf: (i, 0)),        # x tile
                pl.BlockSpec((D_pad, tf), lambda i, kf: (0, kf),
                             pipeline_mode=w_mode),                      # W1 chunk
                pl.BlockSpec((1, tf), lambda i, kf: (0, kf),
                             pipeline_mode=w_mode),                      # b1 chunk
                pl.BlockSpec((tf, D_pad), lambda i, kf: (kf, 0),
                             pipeline_mode=w_mode),                      # W2 chunk
                pl.BlockSpec((1, D_pad), lambda i, kf: (0, 0),
                             pipeline_mode=const_mode),                  # b2
                pl.BlockSpec((1, D_pad), lambda i, kf: (0, 0),
                             pipeline_mode=const_mode),                  # gamma
                pl.BlockSpec((1, D_pad), lambda i, kf: (0, 0),
                             pipeline_mode=const_mode),                  # beta
            ],
            out_specs=pl.BlockSpec((tm, D_pad), lambda i, kf: (i, 0)),
            scratch_shapes=[pltpu.VMEM((tm, D_pad), jnp.float32)],
        ),
        compiler_params=pltpu.CompilerParams(
            dimension_semantics=("parallel", "arbitrary"),
            vmem_limit_bytes=vmem_limit,
        ),
    )(x2d, w1p, b1p, w2p, b2p, gp, btp)

    if (N_pad, D_pad) != (N, d_model):
        out2d = out2d[:N, :d_model]
    return out2d.reshape(B, S, d_model)


def _reference(x, w1, b1, w2, b2, gamma, beta):
    # Pure-JAX reference of the PyTorch forward (eval mode, default branch).
    h = jnp.maximum(x @ w1 + b1, 0.0)
    y = h @ w2 + b2
    z = x + y
    mean = jnp.mean(z, axis=-1, keepdims=True)
    var = jnp.mean((z - mean) ** 2, axis=-1, keepdims=True)
    return (z - mean) * jax.lax.rsqrt(var + LN_EPS) * gamma + beta


def _make_params(key, d_model, d_ff):
    k1, kb1, k2, kb2, kg, kb = jax.random.split(key, 6)
    w1 = jax.random.normal(k1, (d_model, d_ff), jnp.float32) / jnp.sqrt(d_model)
    b1 = jax.random.normal(kb1, (d_ff,), jnp.float32) * 0.01
    w2 = jax.random.normal(k2, (d_ff, d_model), jnp.float32) / jnp.sqrt(d_ff)
    b2 = jax.random.normal(kb2, (d_model,), jnp.float32) * 0.01
    gamma = 1.0 + 0.1 * jax.random.normal(kg, (d_model,), jnp.float32)
    beta = 0.01 * jax.random.normal(kb, (d_model,), jnp.float32)
    return w1, b1, w2, b2, gamma, beta


if __name__ == "__main__":
    key = jax.random.PRNGKey(0)
    kx, kp1, kp2 = jax.random.split(key, 3)

    # Small shapes consistent with the module (exercises token + feature padding).
    B, S, d_model, d_ff = 2, 8, 32, 64
    x = jax.random.normal(kx, (B, S, d_model), dtype=jnp.float32)

    # 1) Resident-weight path (single d_ff chunk).
    p = _make_params(kp1, d_model, d_ff)
    out = jax.block_until_ready(position_wise_ffn(x, *p))
    ref = _reference(x, *p)
    assert out.shape == (B, S, d_model)
    assert jnp.allclose(out, ref, atol=2e-4, rtol=2e-4), "resident path mismatch"

    # 2) d_ff-streamed accumulator path (forced: 2 chunks of 128).
    d_ff2 = 256
    p2 = _make_params(kp2, d_model, d_ff2)
    out2 = jax.block_until_ready(position_wise_ffn(x, *p2, max_ff_chunk=128))
    ref2 = _reference(x, *p2)
    assert jnp.allclose(out2, ref2, atol=2e-4, rtol=2e-4), "streamed path mismatch"

    print("KERNEL_OK")
</pallas_src>

<mosaic_0001>
module attributes {stable_mosaic.version = 11 : i64} {
  func.func @_ffn_kernel(%arg0: i32, %arg1: i32, %arg2: memref<16x128xf32, #tpu.memory_space<vmem>>, %arg3: memref<128x128xf32, #tpu.memory_space<vmem>>, %arg4: memref<1x128xf32, #tpu.memory_space<vmem>>, %arg5: memref<128x128xf32, #tpu.memory_space<vmem>>, %arg6: memref<1x128xf32, #tpu.memory_space<vmem>>, %arg7: memref<1x128xf32, #tpu.memory_space<vmem>>, %arg8: memref<1x128xf32, #tpu.memory_space<vmem>>, %arg9: memref<16x128xf32, #tpu.memory_space<vmem>>, %arg10: memref<16x128xf32, #tpu.memory_space<vmem>>) attributes {dimension_semantics = [#tpu.dimension_semantics<parallel>, #tpu.dimension_semantics<arbitrary>], iteration_bounds = array<i64: 1, 1>, scalar_prefetch = 0 : i64, scratch_operands = 1 : i64, tpu.core_type = #tpu.core_type<tc>, window_params = [{transform_indices = @transform_0, window_bounds = array<i64: 16, 128>}, {pipeline_mode = #tpu.pipeline_mode<synchronous>, transform_indices = @transform_1, window_bounds = array<i64: 128, 128>}, {pipeline_mode = #tpu.pipeline_mode<synchronous>, transform_indices = @transform_2, window_bounds = array<i64: 1, 128>}, {pipeline_mode = #tpu.pipeline_mode<synchronous>, transform_indices = @transform_3, window_bounds = array<i64: 128, 128>}, {pipeline_mode = #tpu.pipeline_mode<synchronous>, transform_indices = @transform_4, window_bounds = array<i64: 1, 128>}, {pipeline_mode = #tpu.pipeline_mode<synchronous>, transform_indices = @transform_5, window_bounds = array<i64: 1, 128>}, {pipeline_mode = #tpu.pipeline_mode<synchronous>, transform_indices = @transform_6, window_bounds = array<i64: 1, 128>}, {transform_indices = @transform_7, window_bounds = array<i64: 16, 128>}]} {
    %c0_i32 = arith.constant 0 : i32
    %0 = arith.cmpi eq, %arg1, %c0_i32 : i32
    %1 = arith.extui %0 : i1 to i32
    %c0_i32_0 = arith.constant 0 : i32
    %2 = arith.cmpi ne, %1, %c0_i32_0 : i32
    scf.if %2 {
      %cst_16 = arith.constant 0.000000e+00 : f32
      %19 = vector.broadcast %cst_16 : f32 to vector<16x128xf32>
      %c0_17 = arith.constant 0 : index
      %c0_18 = arith.constant 0 : index
      %20 = vector.load %arg10[%c0_17, %c0_18] : memref<16x128xf32, #tpu.memory_space<vmem>>, vector<16x128xf32>
      tpu.vector_store %arg10[%c0_17, %c0_18], %19 {strides = array<i32>} : memref<16x128xf32, #tpu.memory_space<vmem>>, vector<16x128xf32>,
    } else {
    }
    %c0 = arith.constant 0 : index
    %c0_1 = arith.constant 0 : index
    %3 = vector.load %arg2[%c0, %c0_1] : memref<16x128xf32, #tpu.memory_space<vmem>>, vector<16x128xf32>
    %c0_2 = arith.constant 0 : index
    %c0_3 = arith.constant 0 : index
    %4 = vector.load %arg3[%c0_2, %c0_3] : memref<128x128xf32, #tpu.memory_space<vmem>>, vector<128x128xf32>
    %c0_4 = arith.constant 0 : index
    %c0_5 = arith.constant 0 : index
    %5 = vector.load %arg5[%c0_4, %c0_5] : memref<128x128xf32, #tpu.memory_space<vmem>>, vector<128x128xf32>
    %c0_6 = arith.constant 0 : index
    %c0_7 = arith.constant 0 : index
    %6 = vector.load %arg4[%c0_6, %c0_7] : memref<1x128xf32, #tpu.memory_space<vmem>>, vector<1x128xf32>
    %cst = arith.constant dense<0.000000e+00> : vector<16x128xf32>
    %7 = tpu.matmul %3, %4, %cst {dimension_numbers = #tpu.dot_dimension_numbers<[1], [0], [0], [1], [0, 0, 1, 1], [], []>} : vector<16x128xf32>, vector<128x128xf32>, vector<16x128xf32> -> vector<16x128xf32>
    %8 = vector.broadcast %6 : vector<1x128xf32> to vector<16x128xf32>
    %9 = arith.addf %7, %8 : vector<16x128xf32>
    %cst_8 = arith.constant 0.000000e+00 : f32
    %10 = vector.broadcast %cst_8 : f32 to vector<16x128xf32>
    %11 = arith.maximumf %9, %10 : vector<16x128xf32>
    %c0_9 = arith.constant 0 : index
    %c0_10 = arith.constant 0 : index
    %12 = vector.load %arg10[%c0_9, %c0_10] : memref<16x128xf32, #tpu.memory_space<vmem>>, vector<16x128xf32>
    %cst_11 = arith.constant dense<0.000000e+00> : vector<16x128xf32>
    %13 = tpu.matmul %11, %5, %cst_11 {dimension_numbers = #tpu.dot_dimension_numbers<[1], [0], [0], [1], [0, 0, 1, 1], [], []>} : vector<16x128xf32>, vector<128x128xf32>, vector<16x128xf32> -> vector<16x128xf32>
    %14 = arith.addf %12, %13 : vector<16x128xf32>
    %c0_12 = arith.constant 0 : index
    %c0_13 = arith.constant 0 : index
    %15 = vector.load %arg10[%c0_12, %c0_13] : memref<16x128xf32, #tpu.memory_space<vmem>>, vector<16x128xf32>
    tpu.vector_store %arg10[%c0_12, %c0_13], %14 {strides = array<i32>} : memref<16x128xf32, #tpu.memory_space<vmem>>, vector<16x128xf32>,
    %c0_i32_14 = arith.constant 0 : i32
    %16 = arith.cmpi eq, %arg1, %c0_i32_14 : i32
    %17 = arith.extui %16 : i1 to i32
    %c0_i32_15 = arith.constant 0 : i32
    %18 = arith.cmpi ne, %17, %c0_i32_15 : i32
    scf.if %18 {
      %c0_16 = arith.constant 0 : index
      %c0_17 = arith.constant 0 : index
      %19 = vector.load %arg6[%c0_16, %c0_17] : memref<1x128xf32, #tpu.memory_space<vmem>>, vector<1x128xf32>
      %c0_18 = arith.constant 0 : index
      %c0_19 = arith.constant 0 : index
      %20 = vector.load %arg7[%c0_18, %c0_19] : memref<1x128xf32, #tpu.memory_space<vmem>>, vector<1x128xf32>
      %c0_20 = arith.constant 0 : index
      %c0_21 = arith.constant 0 : index
      %21 = vector.load %arg8[%c0_20, %c0_21] : memref<1x128xf32, #tpu.memory_space<vmem>>, vector<1x128xf32>
      %c0_22 = arith.constant 0 : index
      %c0_23 = arith.constant 0 : index
      %22 = vector.load %arg10[%c0_22, %c0_23] : memref<16x128xf32, #tpu.memory_space<vmem>>, vector<16x128xf32>
      %23 = vector.broadcast %19 : vector<1x128xf32> to vector<16x128xf32>
      %24 = arith.addf %22, %23 : vector<16x128xf32>
      %25 = arith.addf %3, %24 : vector<16x128xf32>
      %cst_24 = arith.constant dense<0.000000e+00> : vector<16xf32>
      %26 = vector.multi_reduction <add>, %25, %cst_24 [1] : vector<16x128xf32> to vector<16xf32>
      %27 = vector.shape_cast %26 : vector<16xf32> to vector<16x1xf32>
      %cst_25 = arith.constant 3.125000e-02 : f32
      %28 = vector.broadcast %cst_25 : f32 to vector<16x1xf32>
      %29 = arith.mulf %27, %28 : vector<16x1xf32>
      %30 = vector.broadcast %29 : vector<16x1xf32> to vector<16x128xf32>
      %31 = arith.subf %25, %30 : vector<16x128xf32>
      %32 = tpu.iota {dimensions = array<i32: 1>} : vector<1x128xi32>
      %c32_i32 = arith.constant 32 : i32
      %33 = vector.broadcast %c32_i32 : i32 to vector<1x128xi32>
      %34 = arith.cmpi slt, %32, %33 : vector<1x128xi32>
      %cst_26 = arith.constant 0.000000e+00 : f32
      %35 = vector.shape_cast %34 : vector<1x128xi1> to vector<1x128xi1>
      %36 = vector.broadcast %35 : vector<1x128xi1> to vector<16x128xi1>
      %37 = vector.broadcast %cst_26 : f32 to vector<16x128xf32>
      %38 = arith.select %36, %31, %37 : vector<16x128xi1>, vector<16x128xf32>
      %39 = arith.mulf %38, %38 : vector<16x128xf32>
      %cst_27 = arith.constant dense<0.000000e+00> : vector<16xf32>
      %40 = vector.multi_reduction <add>, %39, %cst_27 [1] : vector<16x128xf32> to vector<16xf32>
      %41 = vector.shape_cast %40 : vector<16xf32> to vector<16x1xf32>
      %cst_28 = arith.constant 3.125000e-02 : f32
      %42 = vector.broadcast %cst_28 : f32 to vector<16x1xf32>
      %43 = arith.mulf %41, %42 : vector<16x1xf32>
      %cst_29 = arith.constant 9.99999974E-6 : f32
      %44 = vector.broadcast %cst_29 : f32 to vector<16x1xf32>
      %45 = arith.addf %43, %44 : vector<16x1xf32>
      %46 = math.rsqrt %45 : vector<16x1xf32>
      %47 = vector.broadcast %46 : vector<16x1xf32> to vector<16x128xf32>
      %48 = arith.mulf %38, %47 : vector<16x128xf32>
      %49 = vector.broadcast %20 : vector<1x128xf32> to vector<16x128xf32>
      %50 = arith.mulf %48, %49 : vector<16x128xf32>
      %51 = vector.broadcast %21 : vector<1x128xf32> to vector<16x128xf32>
      %52 = arith.addf %50, %51 : vector<16x128xf32>
      %c0_30 = arith.constant 0 : index
      %c0_31 = arith.constant 0 : index
      %53 = vector.load %arg9[%c0_30, %c0_31] : memref<16x128xf32, #tpu.memory_space<vmem>>, vector<16x128xf32>
      tpu.vector_store %arg9[%c0_30, %c0_31], %52 {strides = array<i32>} : memref<16x128xf32, #tpu.memory_space<vmem>>, vector<16x128xf32>,
    } else {
    }
    return
  }
  func.func @transform_0(%arg0: i32, %arg1: i32) -> (i32, i32) {
    %c0_i32 = arith.constant 0 : i32
    %c0_i32_0 = arith.constant 0 : i32
    return %arg0, %c0_i32 : i32, i32
  }
  func.func @transform_1(%arg0: i32, %arg1: i32) -> (i32, i32) {
    %c0_i32 = arith.constant 0 : i32
    %c0_i32_0 = arith.constant 0 : i32
    return %c0_i32, %arg1 : i32, i32
  }
  func.func @transform_2(%arg0: i32, %arg1: i32) -> (i32, i32) {
    %c0_i32 = arith.constant 0 : i32
    %c0_i32_0 = arith.constant 0 : i32
    return %c0_i32, %arg1 : i32, i32
  }
  func.func @transform_3(%arg0: i32, %arg1: i32) -> (i32, i32) {
    %c0_i32 = arith.constant 0 : i32
    %c0_i32_0 = arith.constant 0 : i32
    return %arg1, %c0_i32 : i32, i32
  }
  func.func @transform_4(%arg0: i32, %arg1: i32) -> (i32, i32) {
    %c0_i32 = arith.constant 0 : i32
    %c0_i32_0 = arith.constant 0 : i32
    %c0_i32_1 = arith.constant 0 : i32
    return %c0_i32, %c0_i32_0 : i32, i32
  }
  func.func @transform_5(%arg0: i32, %arg1: i32) -> (i32, i32) {
    %c0_i32 = arith.constant 0 : i32
    %c0_i32_0 = arith.constant 0 : i32
    %c0_i32_1 = arith.constant 0 : i32
    return %c0_i32, %c0_i32_0 : i32, i32
  }
  func.func @transform_6(%arg0: i32, %arg1: i32) -> (i32, i32) {
    %c0_i32 = arith.constant 0 : i32
    %c0_i32_0 = arith.constant 0 : i32
    %c0_i32_1 = arith.constant 0 : i32
    return %c0_i32, %c0_i32_0 : i32, i32
  }
  func.func @transform_7(%arg0: i32, %arg1: i32) -> (i32, i32) {
    %c0_i32 = arith.constant 0 : i32
    %c0_i32_0 = arith.constant 0 : i32
    return %arg0, %c0_i32 : i32, i32
  }
}

</mosaic_0001>

<llo_original>
// kernel: position_wise_ffn.1
$region0: #{position_wise_ffn.1}
  #allocation0 [shape = 'u32[]', space=smem, size = 0x4, offset = 0x4, fixed_abs, tag = 'smem constant byte address 0x4 - core index']
  #allocation1 [shape = 'u32[72,128]{1,0:T(1,128)}', space=vmem, size = 0x9000, scoped, tag = 'internal scratch']
  #allocation2 [shape = 'f32[16,128]{1,0:T(8,128)}', space=vmem, size = 0x2000, scoped, tag = 'scratch operand']
  %s0 = inlined_call_operand.vmem [shape: f32[16,128], index: 0, kind: input, shape index: {}]
  %s1 = inlined_call_operand.vmem [shape: f32[128,128], index: 1, kind: input, shape index: {}]
  %s2 = inlined_call_operand.vmem [shape: f32[1,128], index: 2, kind: input, shape index: {}]
  %s3 = inlined_call_operand.vmem [shape: f32[128,128], index: 3, kind: input, shape index: {}]
  %s4 = inlined_call_operand.vmem [shape: f32[1,128], index: 4, kind: input, shape index: {}]
  %s5 = inlined_call_operand.vmem [shape: f32[1,128], index: 5, kind: input, shape index: {}]
  %s6 = inlined_call_operand.vmem [shape: f32[1,128], index: 6, kind: input, shape index: {}]
  %s7 = inlined_call_operand.vmem [shape: f32[16,128], index: 7, kind: output, shape index: {}]
  %s8 = sld [smem:[#allocation0]]
  $region46: #{position_wise_ffn.1} parent=0
    _
  %s10 = ssub.s32 1, %s8
  %s11 = scalar_select 0, %s10, %s8
  // Predicated region
  $region2: #{position_wise_ffn.1} parent=0 // pred_check
    _
  $region3: #{position_wise_ffn.1} parent=0 // pred_check_branch
    %13 = sbr.rel (0) target = $region5
  $region4: #{position_wise_ffn.1} parent=0 // pred_region
    _
  $region5: #{position_wise_ffn.1} parent=0 // pred_fallthru
    _
  // Predicated region
  $region6: #{position_wise_ffn.1} parent=0 // pred_check
    _
  $region7: #{position_wise_ffn.1} parent=0 // pred_check_branch
    %15 = sbr.rel (0) target = $region9
  $region8: #{position_wise_ffn.1} parent=0 // pred_region
    _
  $region9: #{position_wise_ffn.1} parent=0 // pred_fallthru
    _
  // Predicated region
  $region10: #{position_wise_ffn.1} parent=0 // pred_check
    _
  $region11: #{position_wise_ffn.1} parent=0 // pred_check_branch
    %17 = sbr.rel (0) target = $region13
  $region12: #{position_wise_ffn.1} parent=0 // pred_region
    _
  $region13: #{position_wise_ffn.1} parent=0 // pred_fallthru
    _
  // Predicated region
  $region14: #{position_wise_ffn.1} parent=0 // pred_check
    _
  $region15: #{position_wise_ffn.1} parent=0 // pred_check_branch
    %19 = sbr.rel (0) target = $region17
  $region16: #{position_wise_ffn.1} parent=0 // pred_region
    _
  $region17: #{position_wise_ffn.1} parent=0 // pred_fallthru
    _
  // Predicated region
  $region18: #{position_wise_ffn.1} parent=0 // pred_check
    _
  $region19: #{position_wise_ffn.1} parent=0 // pred_check_branch
    %21 = sbr.rel (0) target = $region21
  $region20: #{position_wise_ffn.1} parent=0 // pred_region
    _
  $region21: #{position_wise_ffn.1} parent=0 // pred_fallthru
    _
  // Predicated region
  $region22: #{position_wise_ffn.1} parent=0 // pred_check
    _
  $region23: #{position_wise_ffn.1} parent=0 // pred_check_branch
    %23 = sbr.rel (0) target = $region25
  $region24: #{position_wise_ffn.1} parent=0 // pred_region
    _
  $region25: #{position_wise_ffn.1} parent=0 // pred_fallthru
    _
  // Predicated region
  $region26: #{position_wise_ffn.1} parent=0 // pred_check
    _
  $region27: #{position_wise_ffn.1} parent=0 // pred_check_branch
    %25 = sbr.rel (0) target = $region29
  $region28: #{position_wise_ffn.1} parent=0 // pred_region
    _
  $region29: #{position_wise_ffn.1} parent=0 // pred_fallthru
    _
  %p26 = scmp.eq.s32.totalorder 0, 0
  // Predicated region
  $region30: #{position_wise_ffn.1} parent=0 // pred_check
    %p27 = pneg %p26
  $region31: #{position_wise_ffn.1} parent=0 // pred_check_branch
    %29 = sbr.rel (%p27) target = $region33
  $region32: #{position_wise_ffn.1} parent=0 // pred_region
    %30 = vst [vmem:[#allocation2] sm:$0xff] 0.0
    %31 = vst [vmem:[#allocation2 + $0x8] sm:$0xff] 0.0
  $region33: #{position_wise_ffn.1} parent=0 // pred_fallthru
    _
  %v32 = vld [vmem:[%s0] sm:$0xff]
  %v33 = vld [vmem:[%s0 + $0x8] sm:$0xff]
  %v34 = vld [vmem:[%s1] sm:$0xff]
  %v35 = vld [vmem:[%s1 + $0x8] sm:$0xff]
  %v36 = vld [vmem:[%s1 + $0x10] sm:$0xff]
  %v37 = vld [vmem:[%s1 + $0x18] sm:$0xff]
  %v38 = vld [vmem:[%s1 + $0x20] sm:$0xff]
  %v39 = vld [vmem:[%s1 + $0x28] sm:$0xff]
  %v40 = vld [vmem:[%s1 + $0x30] sm:$0xff]
  %v41 = vld [vmem:[%s1 + $0x38] sm:$0xff]
  %v42 = vld [vmem:[%s1 + $0x40] sm:$0xff]
  %v43 = vld [vmem:[%s1 + $0x48] sm:$0xff]
  %v44 = vld [vmem:[%s1 + $0x50] sm:$0xff]
  %v45 = vld [vmem:[%s1 + $0x58] sm:$0xff]
  %v46 = vld [vmem:[%s1 + $0x60] sm:$0xff]
  %v47 = vld [vmem:[%s1 + $0x68] sm:$0xff]
  %v48 = vld [vmem:[%s1 + $0x70] sm:$0xff]
  %v49 = vld [vmem:[%s1 + $0x78] sm:$0xff]
  %v50 = vld [vmem:[%s3] sm:$0xff]
  %v51 = vld [vmem:[%s3 + $0x8] sm:$0xff]
  %v52 = vld [vmem:[%s3 + $0x10] sm:$0xff]
  %v53 = vld [vmem:[%s3 + $0x18] sm:$0xff]
  %v54 = vld [vmem:[%s3 + $0x20] sm:$0xff]
  %v55 = vld [vmem:[%s3 + $0x28] sm:$0xff]
  %v56 = vld [vmem:[%s3 + $0x30] sm:$0xff]
  %v57 = vld [vmem:[%s3 + $0x38] sm:$0xff]
  %v58 = vld [vmem:[%s3 + $0x40] sm:$0xff]
  %v59 = vld [vmem:[%s3 + $0x48] sm:$0xff]
  %v60 = vld [vmem:[%s3 + $0x50] sm:$0xff]
  %v61 = vld [vmem:[%s3 + $0x58] sm:$0xff]
  %v62 = vld [vmem:[%s3 + $0x60] sm:$0xff]
  %v63 = vld [vmem:[%s3 + $0x68] sm:$0xff]
  %v64 = vld [vmem:[%s3 + $0x70] sm:$0xff]
  %v65 = vld [vmem:[%s3 + $0x78] sm:$0xff]
  %v66 = vld [vmem:[%s2] sm:$0x1]
  %v68 = vperm.slane %v66, 0
  %70 = vmatpush.msra.mxu0 %v49
  %71 = vmatpush.msra.mxu0 %v48
  %72 = vmatpush.msra.mxu0 %v47
  %73 = vmatpush.msra.mxu0 %v46
  %74 = vmatpush.msra.mxu0 %v45
  %75 = vmatpush.msra.mxu0 %v44
  %76 = vmatpush.msra.mxu0 %v43
  %77 = vmatpush.msra.mxu0 %v42
  %78 = vmatpush.msra.mxu0 %v41
  %79 = vmatpush.msra.mxu0 %v40
  %80 = vmatpush.msra.mxu0 %v39
  %81 = vmatpush.msra.mxu0 %v38
  %82 = vmatpush.msra.mxu0 %v37
  %83 = vmatpush.msra.mxu0 %v36
  %84 = vmatpush.msra.mxu0 %v35
  %85 = vmatpush.msra.mxu0 %v34
  %86 = vmatmul.f32.gmra.mxu0 %v32
  %v87 = vpop.f32.mrf.mxu0
  %v88 = vadd.f32 %v68, %v87
  %89 = vmatmul.f32.gmra.mxu0 %v33
  %v90 = vpop.f32.mrf.mxu0
  %v91 = vadd.f32 %v68, %v90
  %92 = vdwg.mxu0
  %v93 = vmax.f32 %v88, 0.0
  %v94 = vmax.f32 %v91, 0.0
  %v95 = vld [vmem:[#allocation2] sm:$0xff]
  %v96 = vld [vmem:[#allocation2 + $0x8] sm:$0xff]
  %97 = vmatpush.msra.mxu0 %v65
  %98 = vmatpush.msra.mxu0 %v64
  %99 = vmatpush.msra.mxu0 %v63
  %100 = vmatpush.msra.mxu0 %v62
  %101 = vmatpush.msra.mxu0 %v61
  %102 = vmatpush.msra.mxu0 %v60
  %103 = vmatpush.msra.mxu0 %v59
  %104 = vmatpush.msra.mxu0 %v58
  %105 = vmatpush.msra.mxu0 %v57
  %106 = vmatpush.msra.mxu0 %v56
  %107 = vmatpush.msra.mxu0 %v55
  %108 = vmatpush.msra.mxu0 %v54
  %109 = vmatpush.msra.mxu0 %v53
  %110 = vmatpush.msra.mxu0 %v52
  %111 = vmatpush.msra.mxu0 %v51
  %112 = vmatpush.msra.mxu0 %v50
  %113 = vmatmul.f32.gmra.mxu0 %v93
  %v114 = vpop.f32.mrf.mxu0
  %v115 = vadd.f32 0.0, %v114
  %116 = vmatmul.f32.gmra.mxu0 %v94
  %v117 = vpop.f32.mrf.mxu0
  %v118 = vadd.f32 0.0, %v117
  %119 = vdwg.mxu0
  %v120 = vadd.f32 %v95, %v115
  %v121 = vadd.f32 %v96, %v118
  %122 = vst [vmem:[#allocation2] sm:$0xff] %v120
  %123 = vst [vmem:[#allocation2 + $0x8] sm:$0xff] %v121
  // Predicated region
  $region34: #{position_wise_ffn.1} parent=0 // pred_check
    %p124 = pneg %p26
  $region35: #{position_wise_ffn.1} parent=0 // pred_check_branch
    %126 = sbr.rel (%p124) target = $region37
  $region36: #{position_wise_ffn.1} parent=0 // pred_region
    %v127 = vld [vmem:[%s4] sm:$0x1]
    %v128 = vld [vmem:[%s5] sm:$0x1]
    %v129 = vld [vmem:[%s6] sm:$0x1]
    %v130 = vld [vmem:[#allocation2] sm:$0xff]
    %v131 = vld [vmem:[#allocation2 + $0x8] sm:$0xff]
    %v133 = vperm.slane %v127, 0
    %v135 = vadd.f32 %v130, %v133
    %v136 = vadd.f32 %v131, %v133
    %v137 = vadd.f32 %v32, %v135
    %v138 = vadd.f32 %v33, %v136
    %139 = vadd.xlane.f32.xlu0 %v137
    %v140 = vpop.xlane.xlu0 %139
    %141 = vadd.xlane.f32.xlu0 %v138
    %v142 = vpop.xlane.xlu0 %141
    %v143 = vmul.f32 %v140, 0.03125
    %v144 = vmul.f32 %v142, 0.03125
    %v145 = vsub.f32 %v137, %v143
    %v146 = vsub.f32 %v138, %v144
    %v147 = vlaneseq
    %v148 = vand.u32 %v147, 127
    %vm149 = vcmp.lt.s32.totalorder %v148, 32
    %v150 = vsel %vm149, 1, 0
    %vm151 = vcmp.eq.s32.totalorder %v150, 1
    %v152 = vsel %vm151, %v145, 0.0
    %v153 = vsel %vm151, %v146, 0.0
    %v154 = vmul.f32 %v152, %v152
    %v155 = vmul.f32 %v153, %v153
    %156 = vadd.xlane.f32.xlu0 %v154
    %v157 = vpop.xlane.xlu0 %156
    %158 = vadd.xlane.f32.xlu0 %v155
    %v159 = vpop.xlane.xlu0 %158
    %v160 = vmul.f32 %v157, 0.03125
    %v161 = vmul.f32 %v159, 0.03125
    %v162 = vadd.f32 %v160, 1e-05
    %v163 = vadd.f32 %v161, 1e-05
    %v164 = vrsqrt.pop %v162
    %v165 = vmul.f32 %v164, %v162
    %v166 = vmul.f32 %v165, %v164
    %v167 = vmul.f32 0.5, %v166
    %v168 = vsub.f32 1.5, %v167
    %v169 = vmul.f32 %v164, %v168
    %vm170 = vweird.f32 %v162
    %vm171 = vweird.f32 %v164
    %vm172 = vmor %vm170, %vm171
    %v173 = vsel %vm172, %v164, %v169
    %v174 = vrsqrt.pop %v163
    %v175 = vmul.f32 %v174, %v163
    %v176 = vmul.f32 %v175, %v174
    %v177 = vmul.f32 0.5, %v176
    %v178 = vsub.f32 1.5, %v177
    %v179 = vmul.f32 %v174, %v178
    %vm180 = vweird.f32 %v163
    %vm181 = vweird.f32 %v174
    %vm182 = vmor %vm180, %vm181
    %v183 = vsel %vm182, %v174, %v179
    %v184 = vmul.f32 %v152, %v173
    %v185 = vmul.f32 %v153, %v183
    %v187 = vperm.slane %v128, 0
    %v189 = vmul.f32 %v184, %v187
    %v190 = vmul.f32 %v185, %v187
    %v192 = vperm.slane %v129, 0
    %v194 = vadd.f32 %v189, %v192
    %v195 = vadd.f32 %v190, %v192
    %196 = vst [vmem:[%s7] sm:$0xff] %v194
    %197 = vst [vmem:[%s7 + $0x8] sm:$0xff] %v195
  $region37: #{position_wise_ffn.1} parent=0 // pred_fallthru
    _
  // Predicated region
  $region38: #{position_wise_ffn.1} parent=0 // pred_check
    _
  $region39: #{position_wise_ffn.1} parent=0 // pred_check_branch
    %199 = sbr.rel (0) target = $region41
  $region40: #{position_wise_ffn.1} parent=0 // pred_region
    _
  $region41: #{position_wise_ffn.1} parent=0 // pred_fallthru
    _
  // Predicated region
  $region42: #{position_wise_ffn.1} parent=0 // pred_check
    _
  $region43: #{position_wise_ffn.1} parent=0 // pred_check_branch
    %201 = sbr.rel (0) target = $region45
  $region44: #{position_wise_ffn.1} parent=0 // pred_region
    _
  $region45: #{position_wise_ffn.1} parent=0 // pred_fallthru
    _

</llo_original>
